<compile_context>
chip_gen: v5e
topology: v5e:2x2
jax: 0.10.0
libtpu: 0.0.40
codegen_flags: <defaults>
</compile_context>

<pallas_src>
import functools

import jax
import jax.numpy as jnp
from jax.experimental import pallas as pl
from jax.experimental.pallas import tpu as pltpu

LANE = 128
OUT_ROWS = 8          # transposed-logits rows stored (num_classes=2 padded to one sublane group)


def _round_up(n, m):
    return ((n + m - 1) // m) * m


def _vmem_limit_bytes():
    """Per-generation VMEM budget with headroom (v5e/v6e ~96 MiB, v7x ~48 MiB)."""
    cap = None
    try:
        cap = getattr(pltpu.get_tpu_info(), "vmem_capacity_bytes", None)
    except Exception:
        cap = None
    if not cap:
        return 32 * 1024 * 1024          # conservative value known to work everywhere
    return int(min(cap * 3 // 4, 100 * 1024 * 1024))


def _choose_batch_tile(batch, block_b, sublane):
    """Pick (tb, b_pad).  Large batches get a 128-multiple tile and >=2 grid steps."""
    if batch <= LANE:                     # tiny: single step, block == full array dims
        tb = _round_up(batch, sublane)
        return tb, tb
    b_pad = _round_up(batch, LANE)
    tb = min(_round_up(block_b, LANE), b_pad)
    if b_pad // tb < 2:                   # >=2 steps so v7x megacore can use both TCs
        tb = max(LANE, _round_up(b_pad // 2, LANE))
    return tb, _round_up(batch, tb)


def adnn_mlp_kernel(x_ref, w1_ref, b1_ref, w2_ref, b2_ref, w3_ref, b3_ref, o_ref):
    cdt = w1_ref.dtype                    # compute dtype fed to the MXU (f32 or bf16)
    # l1 + ReLU  (MXU matmul, f32 accumulate; bias/ReLU in f32 on the VPU)
    h1 = jnp.dot(x_ref[...], w1_ref[...], preferred_element_type=jnp.float32)
    h1 = jnp.maximum(h1 + b1_ref[...], 0.0).astype(cdt)
    # l2 + ReLU
    h2 = jnp.dot(h1, w2_ref[...], preferred_element_type=jnp.float32)
    h2 = jnp.maximum(h2 + b2_ref[...], 0.0).astype(cdt)
    # l3: lane-dense 128-column matmul; real classes live in columns [0, 2).
    logits = jnp.dot(h2, w3_ref[...], preferred_element_type=jnp.float32) + b3_ref[...]
    # Compact writeback: aligned XLU transpose (tb,128)->(128,tb), keep 8 rows.
    # Store stays an unmasked lane-dense vst over the batch; output HBM bytes
    # drop 16x vs the 128-column padded layout.
    o_ref[...] = logits.T[:o_ref.shape[0], :].astype(o_ref.dtype)


@functools.partial(jax.jit, static_argnames=("block_b", "compute_dtype"))
def adnn_forward(x, params, *, block_b=1024, compute_dtype=jnp.float32):
    """Fused ADNN forward.  x: (B, input_size) float32.  Returns (B, 2) float32 logits."""
    B, in_f = x.shape
    hidden = params["w1"].shape[1]
    num_classes = params["w3"].shape[1]
    cdt = jnp.dtype(compute_dtype)
    f32 = jnp.float32

    # ---- pad hidden to a lane multiple (exact: padded units are zero through
    #      ReLU and have zero w3 rows).  Last layer is lane-dense (128 cols).
    hp = _round_up(max(hidden, LANE), LANE)
    ncls_mm = LANE
    w1 = jnp.zeros((in_f, hp), f32).at[:, :hidden].set(params["w1"]).astype(cdt)
    b1 = jnp.zeros((1, hp), f32).at[:, :hidden].set(params["b1"])
    w2 = jnp.zeros((hp, hp), f32).at[:hidden, :hidden].set(params["w2"]).astype(cdt)
    b2 = jnp.zeros((1, hp), f32).at[:, :hidden].set(params["b2"])
    w3 = jnp.zeros((hp, ncls_mm), f32).at[:hidden, :num_classes].set(params["w3"]).astype(cdt)
    b3 = jnp.zeros((1, ncls_mm), f32).at[:, :num_classes].set(params["b3"])
    xk = x.astype(cdt)

    # ---- batch tiling (bf16 inputs need a 16-row sublane multiple)
    sublane = 16 if cdt.itemsize < 4 else 8
    tb, b_pad = _choose_batch_tile(B, block_b, sublane)
    if b_pad != B:
        xk = jnp.pad(xk, ((0, b_pad - B), (0, 0)))
    grid = (b_pad // tb,)

    # Weights/biases: constant index_map -> DMA'd once, resident in VMEM.
    resident = lambda a: pl.BlockSpec(a.shape, lambda i: (0, 0))

    wbytes = cdt.itemsize
    flops = 2 * b_pad * (in_f * hp + hp * hp + hp * ncls_mm)
    bytes_accessed = (
        b_pad * in_f * wbytes                       # x stream
        + OUT_ROWS * b_pad * 4                      # compact transposed output
        + (in_f * hp + hp * hp + hp * ncls_mm) * wbytes   # resident weights (once)
        + (hp + hp + ncls_mm) * 4)                  # biases

    out_t = pl.pallas_call(
        adnn_mlp_kernel,
        out_shape=jax.ShapeDtypeStruct((OUT_ROWS, b_pad), jnp.float32),
        grid=grid,
        in_specs=[
            pl.BlockSpec((tb, in_f), lambda i: (i, 0)),   # x: batch-tiled, double-buffered
            resident(w1), resident(b1),
            resident(w2), resident(b2),
            resident(w3), resident(b3),
        ],
        out_specs=pl.BlockSpec((OUT_ROWS, tb), lambda i: (0, i)),  # transposed, compact
        compiler_params=pltpu.CompilerParams(
            # batch axis is embarrassingly parallel -> megacore sharding on v7x
            dimension_semantics=("parallel",),
            vmem_limit_bytes=_vmem_limit_bytes(),
        ),
        cost_estimate=pl.CostEstimate(
            flops=flops, transcendentals=0, bytes_accessed=bytes_accessed),
    )(xk, w1, b1, w2, b2, w3, b3)

    # (classes, batch) -> (batch, classes); strip class- and batch-padding.
    return out_t[:num_classes, :B].T


def init_params(key, input_size, hidden_size, num_classes=2):
    """Deterministic synthetic parameters (PyTorch Linear init, pre-transposed)."""
    k1, k2, k3, k4, k5, k6 = jax.random.split(key, 6)
    s1 = 1.0 / jnp.sqrt(input_size)
    s2 = 1.0 / jnp.sqrt(hidden_size)
    return {
        # stored as (in, out) = transpose of PyTorch's (out, in)
        "w1": jax.random.uniform(k1, (input_size, hidden_size), jnp.float32, -s1, s1),
        "b1": jax.random.uniform(k2, (1, hidden_size), jnp.float32, -s1, s1),
        "w2": jax.random.uniform(k3, (hidden_size, hidden_size), jnp.float32, -s2, s2),
        "b2": jax.random.uniform(k4, (1, hidden_size), jnp.float32, -s2, s2),
        "w3": jax.random.uniform(k5, (hidden_size, num_classes), jnp.float32, -s2, s2),
        "b3": jax.random.uniform(k6, (1, num_classes), jnp.float32, -s2, s2),
    }


def adnn_forward_ref(x, p):
    h1 = jnp.maximum(x @ p["w1"] + p["b1"], 0.0)
    h2 = jnp.maximum(h1 @ p["w2"] + p["b2"], 0.0)
    return h2 @ p["w3"] + p["b3"]


if __name__ == "__main__":
    key = jax.random.PRNGKey(0)
    kx, kp = jax.random.split(key)

    batch = 8
    input_size = 16
    hidden_size = 32

    x = jax.random.normal(kx, (batch, input_size), jnp.float32)
    params = init_params(kp, input_size, hidden_size)

    ref = adnn_forward_ref(x, params)
    out = jax.block_until_ready(adnn_forward(x, params))
    assert out.shape == (batch, 2)
    assert jnp.allclose(out, ref, atol=1e-4, rtol=1e-4)

    # larger batch: exercises the multi-step grid (>=2 steps, megacore-shardable)
    # and the batch-padding path
    xb = jax.random.normal(kx, (1000, input_size), jnp.float32)
    refb = adnn_forward_ref(xb, params)
    outb = jax.block_until_ready(adnn_forward(xb, params))
    assert outb.shape == (1000, 2)
    assert jnp.allclose(outb, refb, atol=1e-4, rtol=1e-4)

    # bf16 compute path (v6e/v7x MXU-native; halves x/weight DMA) -- intentionally
    # lower precision than the f32 PyTorch reference, so compare loosely.
    outb16 = jax.block_until_ready(
        adnn_forward(xb, params, compute_dtype=jnp.bfloat16))
    assert outb16.shape == (1000, 2)
    assert jnp.allclose(outb16, refb, atol=1e-1, rtol=1e-1)

    print("KERNEL_OK")
</pallas_src>

<mosaic_0001>
module attributes {stable_mosaic.version = 11 : i64} {
  func.func @adnn_mlp_kernel(%arg0: i32, %arg1: memref<8x16xf32, #tpu.memory_space<vmem>>, %arg2: memref<16x128xf32, #tpu.memory_space<vmem>>, %arg3: memref<1x128xf32, #tpu.memory_space<vmem>>, %arg4: memref<128x128xf32, #tpu.memory_space<vmem>>, %arg5: memref<1x128xf32, #tpu.memory_space<vmem>>, %arg6: memref<128x128xf32, #tpu.memory_space<vmem>>, %arg7: memref<1x128xf32, #tpu.memory_space<vmem>>, %arg8: memref<8x8xf32, #tpu.memory_space<vmem>>) attributes {dimension_semantics = [#tpu.dimension_semantics<parallel>], iteration_bounds = array<i64: 1>, scalar_prefetch = 0 : i64, scratch_operands = 0 : i64, tpu.core_type = #tpu.core_type<tc>, window_params = [{transform_indices = @transform_0, window_bounds = array<i64: 8, 16>}, {pipeline_mode = #tpu.pipeline_mode<synchronous>, transform_indices = @transform_1, window_bounds = array<i64: 16, 128>}, {pipeline_mode = #tpu.pipeline_mode<synchronous>, transform_indices = @transform_2, window_bounds = array<i64: 1, 128>}, {pipeline_mode = #tpu.pipeline_mode<synchronous>, transform_indices = @transform_3, window_bounds = array<i64: 128, 128>}, {pipeline_mode = #tpu.pipeline_mode<synchronous>, transform_indices = @transform_4, window_bounds = array<i64: 1, 128>}, {pipeline_mode = #tpu.pipeline_mode<synchronous>, transform_indices = @transform_5, window_bounds = array<i64: 128, 128>}, {pipeline_mode = #tpu.pipeline_mode<synchronous>, transform_indices = @transform_6, window_bounds = array<i64: 1, 128>}, {transform_indices = @transform_7, window_bounds = array<i64: 8, 8>}]} {
    %c0 = arith.constant 0 : index
    %c0_0 = arith.constant 0 : index
    %0 = vector.load %arg1[%c0, %c0_0] : memref<8x16xf32, #tpu.memory_space<vmem>>, vector<8x16xf32>
    %c0_1 = arith.constant 0 : index
    %c0_2 = arith.constant 0 : index
    %1 = vector.load %arg2[%c0_1, %c0_2] : memref<16x128xf32, #tpu.memory_space<vmem>>, vector<16x128xf32>
    %cst = arith.constant dense<0.000000e+00> : vector<8x128xf32>
    %2 = tpu.matmul %0, %1, %cst {dimension_numbers = #tpu.dot_dimension_numbers<[1], [0], [0], [1], [0, 0, 1, 1], [], []>} : vector<8x16xf32>, vector<16x128xf32>, vector<8x128xf32> -> vector<8x128xf32>
    %c0_3 = arith.constant 0 : index
    %c0_4 = arith.constant 0 : index
    %3 = vector.load %arg3[%c0_3, %c0_4] : memref<1x128xf32, #tpu.memory_space<vmem>>, vector<1x128xf32>
    %4 = vector.broadcast %3 : vector<1x128xf32> to vector<8x128xf32>
    %5 = arith.addf %2, %4 : vector<8x128xf32>
    %cst_5 = arith.constant 0.000000e+00 : f32
    %6 = vector.broadcast %cst_5 : f32 to vector<8x128xf32>
    %7 = arith.maximumf %5, %6 : vector<8x128xf32>
    %c0_6 = arith.constant 0 : index
    %c0_7 = arith.constant 0 : index
    %8 = vector.load %arg4[%c0_6, %c0_7] : memref<128x128xf32, #tpu.memory_space<vmem>>, vector<128x128xf32>
    %cst_8 = arith.constant dense<0.000000e+00> : vector<8x128xf32>
    %9 = tpu.matmul %7, %8, %cst_8 {dimension_numbers = #tpu.dot_dimension_numbers<[1], [0], [0], [1], [0, 0, 1, 1], [], []>} : vector<8x128xf32>, vector<128x128xf32>, vector<8x128xf32> -> vector<8x128xf32>
    %c0_9 = arith.constant 0 : index
    %c0_10 = arith.constant 0 : index
    %10 = vector.load %arg5[%c0_9, %c0_10] : memref<1x128xf32, #tpu.memory_space<vmem>>, vector<1x128xf32>
    %11 = vector.broadcast %10 : vector<1x128xf32> to vector<8x128xf32>
    %12 = arith.addf %9, %11 : vector<8x128xf32>
    %cst_11 = arith.constant 0.000000e+00 : f32
    %13 = vector.broadcast %cst_11 : f32 to vector<8x128xf32>
    %14 = arith.maximumf %12, %13 : vector<8x128xf32>
    %c0_12 = arith.constant 0 : index
    %c0_13 = arith.constant 0 : index
    %15 = vector.load %arg6[%c0_12, %c0_13] : memref<128x128xf32, #tpu.memory_space<vmem>>, vector<128x128xf32>
    %cst_14 = arith.constant dense<0.000000e+00> : vector<8x128xf32>
    %16 = tpu.matmul %14, %15, %cst_14 {dimension_numbers = #tpu.dot_dimension_numbers<[1], [0], [0], [1], [0, 0, 1, 1], [], []>} : vector<8x128xf32>, vector<128x128xf32>, vector<8x128xf32> -> vector<8x128xf32>
    %c0_15 = arith.constant 0 : index
    %c0_16 = arith.constant 0 : index
    %17 = vector.load %arg7[%c0_15, %c0_16] : memref<1x128xf32, #tpu.memory_space<vmem>>, vector<1x128xf32>
    %18 = vector.broadcast %17 : vector<1x128xf32> to vector<8x128xf32>
    %19 = arith.addf %16, %18 : vector<8x128xf32>
    %20 = tpu.transpose %19, [1, 0] : vector<8x128xf32> -> vector<128x8xf32>
    %21 = vector.extract_strided_slice %20 {offsets = [0, 0], sizes = [8, 8], strides = [1, 1]} : vector<128x8xf32> to vector<8x8xf32>
    %c0_17 = arith.constant 0 : index
    %c0_18 = arith.constant 0 : index
    %22 = vector.load %arg8[%c0_17, %c0_18] : memref<8x8xf32, #tpu.memory_space<vmem>>, vector<8x8xf32>
    tpu.vector_store %arg8[%c0_17, %c0_18], %21 {strides = array<i32>} : memref<8x8xf32, #tpu.memory_space<vmem>>, vector<8x8xf32>,
    return
  }
  func.func @transform_0(%arg0: i32) -> (i32, i32) {
    %c0_i32 = arith.constant 0 : i32
    %c0_i32_0 = arith.constant 0 : i32
    return %arg0, %c0_i32 : i32, i32
  }
  func.func @transform_1(%arg0: i32) -> (i32, i32) {
    %c0_i32 = arith.constant 0 : i32
    %c0_i32_0 = arith.constant 0 : i32
    %c0_i32_1 = arith.constant 0 : i32
    return %c0_i32, %c0_i32_0 : i32, i32
  }
  func.func @transform_2(%arg0: i32) -> (i32, i32) {
    %c0_i32 = arith.constant 0 : i32
    %c0_i32_0 = arith.constant 0 : i32
    %c0_i32_1 = arith.constant 0 : i32
    return %c0_i32, %c0_i32_0 : i32, i32
  }
  func.func @transform_3(%arg0: i32) -> (i32, i32) {
    %c0_i32 = arith.constant 0 : i32
    %c0_i32_0 = arith.constant 0 : i32
    %c0_i32_1 = arith.constant 0 : i32
    return %c0_i32, %c0_i32_0 : i32, i32
  }
  func.func @transform_4(%arg0: i32) -> (i32, i32) {
    %c0_i32 = arith.constant 0 : i32
    %c0_i32_0 = arith.constant 0 : i32
    %c0_i32_1 = arith.constant 0 : i32
    return %c0_i32, %c0_i32_0 : i32, i32
  }
  func.func @transform_5(%arg0: i32) -> (i32, i32) {
    %c0_i32 = arith.constant 0 : i32
    %c0_i32_0 = arith.constant 0 : i32
    %c0_i32_1 = arith.constant 0 : i32
    return %c0_i32, %c0_i32_0 : i32, i32
  }
  func.func @transform_6(%arg0: i32) -> (i32, i32) {
    %c0_i32 = arith.constant 0 : i32
    %c0_i32_0 = arith.constant 0 : i32
    %c0_i32_1 = arith.constant 0 : i32
    return %c0_i32, %c0_i32_0 : i32, i32
  }
  func.func @transform_7(%arg0: i32) -> (i32, i32) {
    %c0_i32 = arith.constant 0 : i32
    %c0_i32_0 = arith.constant 0 : i32
    return %c0_i32, %arg0 : i32, i32
  }
}

</mosaic_0001>

<llo_original>
// kernel: adnn_forward.1
$region0: #{adnn_forward.1}
  #allocation0 [shape = 'u32[]', space=smem, size = 0x4, offset = 0x4, fixed_abs, tag = 'smem constant byte address 0x4 - core index']
  #allocation1 [shape = 'u32[72,128]{1,0:T(1,128)}', space=vmem, size = 0x9000, scoped, tag = 'internal scratch']
  %s0 = inlined_call_operand.vmem [shape: f32[8,16], index: 0, kind: input, shape index: {}]
  %s1 = inlined_call_operand.vmem [shape: f32[16,128], index: 1, kind: input, shape index: {}]
  %s2 = inlined_call_operand.vmem [shape: f32[1,128], index: 2, kind: input, shape index: {}]
  %s3 = inlined_call_operand.vmem [shape: f32[128,128], index: 3, kind: input, shape index: {}]
  %s4 = inlined_call_operand.vmem [shape: f32[1,128], index: 4, kind: input, shape index: {}]
  %s5 = inlined_call_operand.vmem [shape: f32[128,128], index: 5, kind: input, shape index: {}]
  %s6 = inlined_call_operand.vmem [shape: f32[1,128], index: 6, kind: input, shape index: {}]
  %s7 = inlined_call_operand.vmem [shape: f32[8,8], index: 7, kind: output, shape index: {}]
  %s8 = sld [smem:[#allocation0]]
  $region38: #{adnn_forward.1} parent=0
    _
  %s10 = ssub.s32 1, %s8
  %s11 = scalar_select 0, %s10, %s8
  // Predicated region
  $region2: #{adnn_forward.1} parent=0 // pred_check
    _
  $region3: #{adnn_forward.1} parent=0 // pred_check_branch
    %13 = sbr.rel (0) target = $region5
  $region4: #{adnn_forward.1} parent=0 // pred_region
    _
  $region5: #{adnn_forward.1} parent=0 // pred_fallthru
    _
  // Predicated region
  $region6: #{adnn_forward.1} parent=0 // pred_check
    _
  $region7: #{adnn_forward.1} parent=0 // pred_check_branch
    %15 = sbr.rel (0) target = $region9
  $region8: #{adnn_forward.1} parent=0 // pred_region
    _
  $region9: #{adnn_forward.1} parent=0 // pred_fallthru
    _
  // Predicated region
  $region10: #{adnn_forward.1} parent=0 // pred_check
    _
  $region11: #{adnn_forward.1} parent=0 // pred_check_branch
    %17 = sbr.rel (0) target = $region13
  $region12: #{adnn_forward.1} parent=0 // pred_region
    _
  $region13: #{adnn_forward.1} parent=0 // pred_fallthru
    _
  // Predicated region
  $region14: #{adnn_forward.1} parent=0 // pred_check
    _
  $region15: #{adnn_forward.1} parent=0 // pred_check_branch
    %19 = sbr.rel (0) target = $region17
  $region16: #{adnn_forward.1} parent=0 // pred_region
    _
  $region17: #{adnn_forward.1} parent=0 // pred_fallthru
    _
  // Predicated region
  $region18: #{adnn_forward.1} parent=0 // pred_check
    _
  $region19: #{adnn_forward.1} parent=0 // pred_check_branch
    %21 = sbr.rel (0) target = $region21
  $region20: #{adnn_forward.1} parent=0 // pred_region
    _
  $region21: #{adnn_forward.1} parent=0 // pred_fallthru
    _
  // Predicated region
  $region22: #{adnn_forward.1} parent=0 // pred_check
    _
  $region23: #{adnn_forward.1} parent=0 // pred_check_branch
    %23 = sbr.rel (0) target = $region25
  $region24: #{adnn_forward.1} parent=0 // pred_region
    _
  $region25: #{adnn_forward.1} parent=0 // pred_fallthru
    _
  // Predicated region
  $region26: #{adnn_forward.1} parent=0 // pred_check
    _
  $region27: #{adnn_forward.1} parent=0 // pred_check_branch
    %25 = sbr.rel (0) target = $region29
  $region28: #{adnn_forward.1} parent=0 // pred_region
    _
  $region29: #{adnn_forward.1} parent=0 // pred_fallthru
    _
  %v26 = vld [vmem:[%s0] sm:$0xff]
  %v27 = vld [vmem:[%s1] sm:$0xff]
  %v28 = vld [vmem:[%s1 + $0x8] sm:$0xff]
  %v29 = vld [vmem:[%s2] sm:$0x1]
  %v31 = vperm.slane %v29, 0
  %vm33 = vcmask 130048
  %v35 = vsel %vm33, %v26, 0
  %37 = vmatpush.msra.mxu0 0.0
  %38 = vmatpush.msra.mxu0 0.0
  %39 = vmatpush.msra.mxu0 0.0
  %40 = vmatpush.msra.mxu0 0.0
  %41 = vmatpush.msra.mxu0 0.0
  %42 = vmatpush.msra.mxu0 0.0
  %43 = vmatpush.msra.mxu0 0.0
  %44 = vmatpush.msra.mxu0 0.0
  %45 = vmatpush.msra.mxu0 0.0
  %46 = vmatpush.msra.mxu0 0.0
  %47 = vmatpush.msra.mxu0 0.0
  %48 = vmatpush.msra.mxu0 0.0
  %49 = vmatpush.msra.mxu0 0.0
  %50 = vmatpush.msra.mxu0 0.0
  %51 = vmatpush.msra.mxu0 %v28
  %52 = vmatpush.msra.mxu0 %v27
  %53 = vmatmul.f32.gmra.mxu0 %v35
  %v54 = vpop.f32.mrf.mxu0
  %v55 = vadd.f32 %v31, %v54
  %56 = vdwg.mxu0
  %v57 = vmax.f32 %v55, 0.0
  %v58 = vld [vmem:[%s3] sm:$0xff]
  %v59 = vld [vmem:[%s3 + $0x8] sm:$0xff]
  %v60 = vld [vmem:[%s3 + $0x10] sm:$0xff]
  %v61 = vld [vmem:[%s3 + $0x18] sm:$0xff]
  %v62 = vld [vmem:[%s3 + $0x20] sm:$0xff]
  %v63 = vld [vmem:[%s3 + $0x28] sm:$0xff]
  %v64 = vld [vmem:[%s3 + $0x30] sm:$0xff]
  %v65 = vld [vmem:[%s3 + $0x38] sm:$0xff]
  %v66 = vld [vmem:[%s3 + $0x40] sm:$0xff]
  %v67 = vld [vmem:[%s3 + $0x48] sm:$0xff]
  %v68 = vld [vmem:[%s3 + $0x50] sm:$0xff]
  %v69 = vld [vmem:[%s3 + $0x58] sm:$0xff]
  %v70 = vld [vmem:[%s3 + $0x60] sm:$0xff]
  %v71 = vld [vmem:[%s3 + $0x68] sm:$0xff]
  %v72 = vld [vmem:[%s3 + $0x70] sm:$0xff]
  %v73 = vld [vmem:[%s3 + $0x78] sm:$0xff]
  %v74 = vld [vmem:[%s4] sm:$0x1]
  %v76 = vperm.slane %v74, 0
  %78 = vmatpush.msra.mxu0 %v73
  %79 = vmatpush.msra.mxu0 %v72
  %80 = vmatpush.msra.mxu0 %v71
  %81 = vmatpush.msra.mxu0 %v70
  %82 = vmatpush.msra.mxu0 %v69
  %83 = vmatpush.msra.mxu0 %v68
  %84 = vmatpush.msra.mxu0 %v67
  %85 = vmatpush.msra.mxu0 %v66
  %86 = vmatpush.msra.mxu0 %v65
  %87 = vmatpush.msra.mxu0 %v64
  %88 = vmatpush.msra.mxu0 %v63
  %89 = vmatpush.msra.mxu0 %v62
  %90 = vmatpush.msra.mxu0 %v61
  %91 = vmatpush.msra.mxu0 %v60
  %92 = vmatpush.msra.mxu0 %v59
  %93 = vmatpush.msra.mxu0 %v58
  %94 = vmatmul.f32.gmra.mxu0 %v57
  %v95 = vpop.f32.mrf.mxu0
  %v96 = vadd.f32 %v76, %v95
  %97 = vdwg.mxu0
  %v98 = vmax.f32 %v96, 0.0
  %v99 = vld [vmem:[%s5] sm:$0xff]
  %v100 = vld [vmem:[%s5 + $0x8] sm:$0xff]
  %v101 = vld [vmem:[%s5 + $0x10] sm:$0xff]
  %v102 = vld [vmem:[%s5 + $0x18] sm:$0xff]
  %v103 = vld [vmem:[%s5 + $0x20] sm:$0xff]
  %v104 = vld [vmem:[%s5 + $0x28] sm:$0xff]
  %v105 = vld [vmem:[%s5 + $0x30] sm:$0xff]
  %v106 = vld [vmem:[%s5 + $0x38] sm:$0xff]
  %v107 = vld [vmem:[%s5 + $0x40] sm:$0xff]
  %v108 = vld [vmem:[%s5 + $0x48] sm:$0xff]
  %v109 = vld [vmem:[%s5 + $0x50] sm:$0xff]
  %v110 = vld [vmem:[%s5 + $0x58] sm:$0xff]
  %v111 = vld [vmem:[%s5 + $0x60] sm:$0xff]
  %v112 = vld [vmem:[%s5 + $0x68] sm:$0xff]
  %v113 = vld [vmem:[%s5 + $0x70] sm:$0xff]
  %v114 = vld [vmem:[%s5 + $0x78] sm:$0xff]
  %v115 = vld [vmem:[%s6] sm:$0x1]
  %v117 = vperm.slane %v115, 0
  %119 = vmatpush.msra.mxu0 %v114
  %120 = vmatpush.msra.mxu0 %v113
  %121 = vmatpush.msra.mxu0 %v112
  %122 = vmatpush.msra.mxu0 %v111
  %123 = vmatpush.msra.mxu0 %v110
  %124 = vmatpush.msra.mxu0 %v109
  %125 = vmatpush.msra.mxu0 %v108
  %126 = vmatpush.msra.mxu0 %v107
  %127 = vmatpush.msra.mxu0 %v106
  %128 = vmatpush.msra.mxu0 %v105
  %129 = vmatpush.msra.mxu0 %v104
  %130 = vmatpush.msra.mxu0 %v103
  %131 = vmatpush.msra.mxu0 %v102
  %132 = vmatpush.msra.mxu0 %v101
  %133 = vmatpush.msra.mxu0 %v100
  %134 = vmatpush.msra.mxu0 %v99
  %135 = vmatmul.f32.gmra.mxu0 %v98
  %v136 = vpop.f32.mrf.mxu0
  %v137 = vadd.f32 %v117, %v136
  %138 = vdwg.mxu0
  %139 = vxpose.xlu0.b32.start [1/16] %v137, 128
  %140 = vxpose.xlu0.b32.cont [2/16] 0.0, 128
  %141 = vxpose.xlu0.b32.cont [3/16] 0.0, 128
  %142 = vxpose.xlu0.b32.cont [4/16] 0.0, 128
  %143 = vxpose.xlu0.b32.cont [5/16] 0.0, 128
  %144 = vxpose.xlu0.b32.cont [6/16] 0.0, 128
  %145 = vxpose.xlu0.b32.cont [7/16] 0.0, 128
  %146 = vxpose.xlu0.b32.cont [8/16] 0.0, 128
  %147 = vxpose.xlu0.b32.cont [9/16] 0.0, 128
  %148 = vxpose.xlu0.b32.cont [10/16] 0.0, 128
  %149 = vxpose.xlu0.b32.cont [11/16] 0.0, 128
  %150 = vxpose.xlu0.b32.cont [12/16] 0.0, 128
  %151 = vxpose.xlu0.b32.cont [13/16] 0.0, 128
  %152 = vxpose.xlu0.b32.cont [14/16] 0.0, 128
  %153 = vxpose.xlu0.b32.cont [15/16] 0.0, 128
  %154 = vxpose.xlu0.b32.end [16/16] 0.0, 128
  %v155 = vpop.trf.xlu0
  %v156 = vpop.trf.xlu0
  %v157 = vpop.trf.xlu0
  %v158 = vpop.trf.xlu0
  %v159 = vpop.trf.xlu0
  %v160 = vpop.trf.xlu0
  %v161 = vpop.trf.xlu0
  %v162 = vpop.trf.xlu0
  %v163 = vpop.trf.xlu0
  %v164 = vpop.trf.xlu0
  %v165 = vpop.trf.xlu0
  %v166 = vpop.trf.xlu0
  %v167 = vpop.trf.xlu0
  %v168 = vpop.trf.xlu0
  %v169 = vpop.trf.xlu0
  %v170 = vpop.trf.xlu0
  %vm171 = vcmask 64512
  %172 = vst.msk [vmem:[%s7] sm:$0xff] %vm171, %v155
  // Predicated region
  $region30: #{adnn_forward.1} parent=0 // pred_check
    _
  $region31: #{adnn_forward.1} parent=0 // pred_check_branch
    %174 = sbr.rel (0) target = $region33
  $region32: #{adnn_forward.1} parent=0 // pred_region
    _
  $region33: #{adnn_forward.1} parent=0 // pred_fallthru
    _
  // Predicated region
  $region34: #{adnn_forward.1} parent=0 // pred_check
    _
  $region35: #{adnn_forward.1} parent=0 // pred_check_branch
    %176 = sbr.rel (0) target = $region37
  $region36: #{adnn_forward.1} parent=0 // pred_region
    _
  $region37: #{adnn_forward.1} parent=0 // pred_fallthru
    _

</llo_original>
